<compile_context>
chip_gen: v5e
topology: v5e:2x2
jax: 0.10.0
libtpu: 0.0.40
codegen_flags: <defaults>
</compile_context>

<pallas_src>
import functools
import math

import jax
import jax.numpy as jnp
from jax.experimental import pallas as pl
from jax.experimental.pallas import tpu as pltpu

F32 = jnp.float32
BF16 = jnp.bfloat16
VMEM_LIMIT = 64 * 1024 * 1024


def _layernorm(x, w, b, eps=1e-5):
    mu = jnp.mean(x, axis=-1, keepdims=True)
    var = jnp.mean((x - mu) ** 2, axis=-1, keepdims=True)
    return (x - mu) * jax.lax.rsqrt(var + eps) * w + b


# ---------------------------------------------------------------------------
# Kernel A: LN1 + fused QKV projection, tiled over (batch, q-tile).
#           Writes q/k/v in bf16, per-head layout (B, H, T, hd).
# ---------------------------------------------------------------------------
def _qkv_kernel(n_head, x_ref, ln1w, ln1b, wqkv, bqkv, q_ref, k_ref, v_ref):
    C = x_ref.shape[2]
    hd = C // n_head
    x = x_ref[0]                                                   # (TQ, C) f32
    h = _layernorm(x, ln1w[...], ln1b[...]).astype(BF16)
    qkv = jnp.dot(h, wqkv[...], preferred_element_type=F32) + bqkv[...]   # (TQ, 3C) f32
    # Split heads with static lane slices (cheap stores; no transposes in kernel B).
    for hh in range(n_head):
        q_ref[0, hh] = qkv[:, hh * hd:(hh + 1) * hd].astype(BF16)
        k_ref[0, hh] = qkv[:, C + hh * hd:C + (hh + 1) * hd].astype(BF16)
        v_ref[0, hh] = qkv[:, 2 * C + hh * hd:2 * C + (hh + 1) * hd].astype(BF16)


def qkv_proj(x, p, *, n_head, q_tile):
    B, T, C = x.shape
    hd = C // n_head
    nt = T // q_tile
    head_spec = pl.BlockSpec((1, n_head, q_tile, hd), lambda b, t: (b, 0, t, 0))
    return pl.pallas_call(
        functools.partial(_qkv_kernel, n_head),
        out_shape=tuple(jax.ShapeDtypeStruct((B, n_head, T, hd), BF16) for _ in range(3)),
        grid=(B, nt),
        in_specs=[
            pl.BlockSpec((1, q_tile, C), lambda b, t: (b, t, 0)),
            pl.BlockSpec((1, C), lambda b, t: (0, 0)),
            pl.BlockSpec((1, C), lambda b, t: (0, 0)),
            pl.BlockSpec((C, 3 * C), lambda b, t: (0, 0)),
            pl.BlockSpec((1, 3 * C), lambda b, t: (0, 0)),
        ],
        out_specs=(head_spec, head_spec, head_spec),
        compiler_params=pltpu.CompilerParams(
            dimension_semantics=("parallel", "parallel"),
            vmem_limit_bytes=VMEM_LIMIT),
    )(x, p["ln1w"], p["ln1b"], p["wqkv"], p["bqkv"])


# ---------------------------------------------------------------------------
# Kernel B: attention (heads batched) + proj + residual + LN2 + chunked MLP
#           (+ optional fused ln_f on the last block).
#           grid = (batch, q-tile, mlp-hidden-chunk)
# ---------------------------------------------------------------------------
def _attn_mlp_kernel(n_head, apply_lnf,
                     x_ref, q_ref, k_ref, v_ref, wproj, bproj, ln2w, ln2b,
                     wfc, bfc, wfc2, bfc2, lnfw, lnfb,
                     out_ref, acc_sc, tmp_sc):
    c = pl.program_id(2)
    nc = pl.num_programs(2)
    C = x_ref.shape[2]
    hd = C // n_head
    scale = 1.0 / math.sqrt(hd)

    # --- attention + output proj + residual: once per (batch, q-tile) ---
    @pl.when(c == 0)
    def _attention():
        x = x_ref[0]                         # (TQ, C) f32 residual stream
        q = q_ref[0] * scale                 # (H, TQ, hd) bf16, 1/sqrt(hd) folded into q
        k = k_ref[0]                         # (H, T,  hd) bf16 (full sequence)
        v = v_ref[0]                         # (H, T,  hd) bf16
        # Heads batched in single dot_generals; scores & softmax in f32.
        s = jnp.einsum("hqd,hkd->hqk", q, k, preferred_element_type=F32)
        s = s - jnp.max(s, axis=-1, keepdims=True)
        p = jnp.exp(s)
        p = p * pl.reciprocal(jnp.sum(p, axis=-1, keepdims=True), approx=True)
        o = jnp.einsum("hqk,hkd->hqd", p.astype(BF16), v,
                       preferred_element_type=F32)                # (H, TQ, hd) f32
        # Reassemble heads into (TQ, C) via lane-slice stores (no concatenate).
        for hh in range(n_head):
            tmp_sc[:, hh * hd:(hh + 1) * hd] = o[hh].astype(BF16)
        y = jnp.dot(tmp_sc[...], wproj[...], preferred_element_type=F32) + bproj[...]
        xa = x + y                                                # residual after attention
        acc_sc[...] = xa + bfc2[...]                              # fc2 bias added exactly once
        tmp_sc[...] = _layernorm(xa, ln2w[...], ln2b[...]).astype(BF16)

    # --- MLP, chunked over the 4C hidden dimension (grid axis 2) ---
    h = jnp.dot(tmp_sc[...], wfc[...], preferred_element_type=F32) + bfc[...]
    h = jax.nn.gelu(h)                                            # GPT "new gelu" (tanh)
    acc_sc[...] = acc_sc[...] + jnp.dot(h.astype(BF16), wfc2[...],
                                        preferred_element_type=F32)

    @pl.when(c == nc - 1)
    def _finalize():
        xo = acc_sc[...]
        if apply_lnf:                                             # ln_f fused into last block
            xo = _layernorm(xo, lnfw[...], lnfb[...])
        out_ref[...] = xo[None]


def transformer_block(x, p, *, n_head, q_tile, mlp_chunk, lnf_w, lnf_b, apply_lnf):
    B, T, C = x.shape
    hd = C // n_head
    nt = T // q_tile
    hidden = p["wfc"].shape[1]
    nc = hidden // mlp_chunk

    q, k, v = qkv_proj(x, p, n_head=n_head, q_tile=q_tile)

    const2 = lambda b, t, c: (0, 0)
    return pl.pallas_call(
        functools.partial(_attn_mlp_kernel, n_head, apply_lnf),
        out_shape=jax.ShapeDtypeStruct((B, T, C), F32),
        grid=(B, nt, nc),
        in_specs=[
            pl.BlockSpec((1, q_tile, C), lambda b, t, c: (b, t, 0)),             # x tile (residual)
            pl.BlockSpec((1, n_head, q_tile, hd), lambda b, t, c: (b, 0, t, 0)),  # q tile
            pl.BlockSpec((1, n_head, T, hd), lambda b, t, c: (b, 0, 0, 0)),       # k (full seq)
            pl.BlockSpec((1, n_head, T, hd), lambda b, t, c: (b, 0, 0, 0)),       # v (full seq)
            pl.BlockSpec((C, C), const2),                                         # wproj (bf16)
            pl.BlockSpec((1, C), const2),                                         # bproj
            pl.BlockSpec((1, C), const2),                                         # ln2 w
            pl.BlockSpec((1, C), const2),                                         # ln2 b
            pl.BlockSpec((C, mlp_chunk), lambda b, t, c: (0, c)),                 # wfc chunk
            pl.BlockSpec((1, mlp_chunk), lambda b, t, c: (0, c)),                 # bfc chunk
            pl.BlockSpec((mlp_chunk, C), lambda b, t, c: (c, 0)),                 # wfc2 chunk
            pl.BlockSpec((1, C), const2),                                         # bfc2
            pl.BlockSpec((1, C), const2),                                         # ln_f w
            pl.BlockSpec((1, C), const2),                                         # ln_f b
        ],
        out_specs=pl.BlockSpec((1, q_tile, C), lambda b, t, c: (b, t, 0)),
        scratch_shapes=[pltpu.VMEM((q_tile, C), F32),   # residual + MLP accumulator
                        pltpu.VMEM((q_tile, C), BF16)], # head assembly / ln2(x) activations
        compiler_params=pltpu.CompilerParams(
            dimension_semantics=("parallel", "parallel", "arbitrary"),
            vmem_limit_bytes=VMEM_LIMIT),
    )(x, q, k, v, p["wproj"], p["bproj"], p["ln2w"], p["ln2b"],
      p["wfc"], p["bfc"], p["wfc2"], p["bfc2"], lnf_w, lnf_b)


# ---------------------------------------------------------------------------
# Parameter initialization (deterministic, synthetic).
# Matmul weights are stored bf16 (halves HBM traffic / VMEM footprint);
# biases / LayerNorm params / embeddings stay f32.
# ---------------------------------------------------------------------------
def init_params(key, *, vocab, n_codes, block_size, n_layer, n_head, n_embd):
    C = n_embd
    ks = iter(jax.random.split(key, 4 + n_codes + 8 * n_layer))

    def nrm(shape, dtype=BF16, scale=0.02):
        return (scale * jax.random.normal(next(ks), shape)).astype(dtype)

    params = {
        "wtes": [nrm((vocab, C), F32) for _ in range(n_codes)],
        "wpe": nrm((block_size, C), F32),
        "blocks": [],
        "lnf_w": jnp.ones((1, C), F32),
        "lnf_b": jnp.zeros((1, C), F32),
    }
    for _ in range(n_layer):
        params["blocks"].append({
            "ln1w": jnp.ones((1, C), F32), "ln1b": jnp.zeros((1, C), F32),
            "wqkv": nrm((C, 3 * C)), "bqkv": nrm((1, 3 * C), F32),
            "wproj": nrm((C, C)), "bproj": nrm((1, C), F32),
            "ln2w": jnp.ones((1, C), F32), "ln2b": jnp.zeros((1, C), F32),
            "wfc": nrm((C, 4 * C)), "bfc": nrm((1, 4 * C), F32),
            "wfc2": nrm((4 * C, C)), "bfc2": nrm((1, C), F32),
        })
    return params


# ---------------------------------------------------------------------------
# FineModel.forward(pred_idx, idx)
# ---------------------------------------------------------------------------
def fine_model_forward(params, pred_idx, idx, *, n_head, q_tile=128, mlp_chunk=512):
    B, T, n_codes = idx.shape
    K = pred_idx + 1  # static Python int, matching the torch slice [..., :pred_idx+1]
    C = params["wpe"].shape[1]

    # Embedding gathers stay in plain JAX (gather has no rectangular BlockSpec form);
    # summed directly (no (B,K,T,C) stack) and fused with the positional add by XLA.
    x = params["wpe"][:T][None].astype(F32)                    # (1, T, C)
    for i in range(K):
        x = x + jnp.take(params["wtes"][i], idx[:, :, i], axis=0)
    # dropout is identity in eval.

    # Tile-size hygiene for small / odd shapes.
    q_tile = min(q_tile, T)
    if T % q_tile or q_tile % 8:
        q_tile = T
    hidden = params["blocks"][0]["wfc"].shape[1]
    mlp_chunk = min(mlp_chunk, hidden)
    if hidden % mlp_chunk or mlp_chunk % 128:
        mlp_chunk = hidden

    n_layer = len(params["blocks"])
    for li, blk in enumerate(params["blocks"]):
        x = transformer_block(
            x, blk, n_head=n_head, q_tile=q_tile, mlp_chunk=mlp_chunk,
            lnf_w=params["lnf_w"], lnf_b=params["lnf_b"],
            apply_lnf=(li == n_layer - 1))        # ln_f fused into last block
    return x


# TODO(synk): the OpenVINO core.read_model() checkpoint load has no Pallas equivalent;
#             parameters are synthesized deterministically instead.

if __name__ == "__main__":
    B, T, C = 2, 32, 128
    n_head, n_layer = 4, 2
    n_codes, vocab, block_size = 8, 64, 32
    pred_idx = 2

    key = jax.random.PRNGKey(0)
    pkey, ikey = jax.random.split(key)
    params = init_params(pkey, vocab=vocab, n_codes=n_codes, block_size=block_size,
                         n_layer=n_layer, n_head=n_head, n_embd=C)
    idx = jax.random.randint(ikey, (B, T, n_codes), 0, vocab, dtype=jnp.int32)

    # Small tiles so the q-tile and MLP-chunk grid axes are genuinely exercised
    # (nt=2, nc=2) at these test shapes; defaults are 128 / 512 for real Bark sizes.
    out = fine_model_forward(params, pred_idx, idx, n_head=n_head,
                             q_tile=16, mlp_chunk=256)
    out = jax.block_until_ready(out)
    assert out.shape == (B, T, C) and out.dtype == jnp.float32
    print("KERNEL_OK")
</pallas_src>

<mosaic_0001>
module attributes {stable_mosaic.version = 11 : i64} {
  func.func @_qkv_kernel(%arg0: i32, %arg1: i32, %arg2: memref<1x16x128xf32, #tpu.memory_space<vmem>>, %arg3: memref<1x128xf32, #tpu.memory_space<vmem>>, %arg4: memref<1x128xf32, #tpu.memory_space<vmem>>, %arg5: memref<128x384xbf16, #tpu.memory_space<vmem>>, %arg6: memref<1x384xf32, #tpu.memory_space<vmem>>, %arg7: memref<1x4x16x32xbf16, #tpu.memory_space<vmem>>, %arg8: memref<1x4x16x32xbf16, #tpu.memory_space<vmem>>, %arg9: memref<1x4x16x32xbf16, #tpu.memory_space<vmem>>) attributes {dimension_semantics = [#tpu.dimension_semantics<parallel>, #tpu.dimension_semantics<parallel>], iteration_bounds = array<i64: 2, 2>, scalar_prefetch = 0 : i64, scratch_operands = 0 : i64, tpu.core_type = #tpu.core_type<tc>, window_params = [{transform_indices = @transform_0, window_bounds = array<i64: 1, 16, 128>}, {pipeline_mode = #tpu.pipeline_mode<synchronous>, transform_indices = @transform_1, window_bounds = array<i64: 1, 128>}, {pipeline_mode = #tpu.pipeline_mode<synchronous>, transform_indices = @transform_2, window_bounds = array<i64: 1, 128>}, {pipeline_mode = #tpu.pipeline_mode<synchronous>, transform_indices = @transform_3, window_bounds = array<i64: 128, 384>}, {pipeline_mode = #tpu.pipeline_mode<synchronous>, transform_indices = @transform_4, window_bounds = array<i64: 1, 384>}, {transform_indices = @transform_5, window_bounds = array<i64: 1, 4, 16, 32>}, {transform_indices = @transform_6, window_bounds = array<i64: 1, 4, 16, 32>}, {transform_indices = @transform_7, window_bounds = array<i64: 1, 4, 16, 32>}]} {
    %c0 = arith.constant 0 : index
    %c0_0 = arith.constant 0 : index
    %c0_1 = arith.constant 0 : index
    %0 = vector.load %arg2[%c0, %c0_0, %c0_1] : memref<1x16x128xf32, #tpu.memory_space<vmem>>, vector<1x16x128xf32>
    %1 = vector.shape_cast %0 : vector<1x16x128xf32> to vector<16x128xf32>
    %c0_2 = arith.constant 0 : index
    %c0_3 = arith.constant 0 : index
    %2 = vector.load %arg3[%c0_2, %c0_3] : memref<1x128xf32, #tpu.memory_space<vmem>>, vector<1x128xf32>
    %c0_4 = arith.constant 0 : index
    %c0_5 = arith.constant 0 : index
    %3 = vector.load %arg4[%c0_4, %c0_5] : memref<1x128xf32, #tpu.memory_space<vmem>>, vector<1x128xf32>
    %cst = arith.constant dense<0.000000e+00> : vector<16xf32>
    %4 = vector.multi_reduction <add>, %1, %cst [1] : vector<16x128xf32> to vector<16xf32>
    %5 = vector.shape_cast %4 : vector<16xf32> to vector<16x1xf32>
    %cst_6 = arith.constant 1.280000e+02 : f32
    %6 = vector.broadcast %cst_6 : f32 to vector<16x1xf32>
    %7 = arith.divf %5, %6 : vector<16x1xf32>
    %8 = vector.broadcast %7 : vector<16x1xf32> to vector<16x128xf32>
    %9 = arith.subf %1, %8 : vector<16x128xf32>
    %10 = arith.mulf %9, %9 : vector<16x128xf32>
    %cst_7 = arith.constant dense<0.000000e+00> : vector<16xf32>
    %11 = vector.multi_reduction <add>, %10, %cst_7 [1] : vector<16x128xf32> to vector<16xf32>
    %12 = vector.shape_cast %11 : vector<16xf32> to vector<16x1xf32>
    %cst_8 = arith.constant 1.280000e+02 : f32
    %13 = vector.broadcast %cst_8 : f32 to vector<16x1xf32>
    %14 = arith.divf %12, %13 : vector<16x1xf32>
    %15 = vector.broadcast %7 : vector<16x1xf32> to vector<16x128xf32>
    %16 = arith.subf %1, %15 : vector<16x128xf32>
    %cst_9 = arith.constant 9.99999974E-6 : f32
    %17 = vector.broadcast %cst_9 : f32 to vector<16x1xf32>
    %18 = arith.addf %14, %17 : vector<16x1xf32>
    %19 = math.rsqrt %18 : vector<16x1xf32>
    %20 = vector.broadcast %19 : vector<16x1xf32> to vector<16x128xf32>
    %21 = arith.mulf %16, %20 : vector<16x128xf32>
    %22 = vector.broadcast %2 : vector<1x128xf32> to vector<16x128xf32>
    %23 = arith.mulf %21, %22 : vector<16x128xf32>
    %24 = vector.broadcast %3 : vector<1x128xf32> to vector<16x128xf32>
    %25 = arith.addf %23, %24 : vector<16x128xf32>
    %26 = arith.truncf %25 : vector<16x128xf32> to vector<16x128xbf16>
    %c0_10 = arith.constant 0 : index
    %c0_11 = arith.constant 0 : index
    %27 = vector.load %arg5[%c0_10, %c0_11] : memref<128x384xbf16, #tpu.memory_space<vmem>>, vector<128x384xbf16>
    %cst_12 = arith.constant dense<0.000000e+00> : vector<16x384xf32>
    %28 = tpu.matmul %26, %27, %cst_12 {dimension_numbers = #tpu.dot_dimension_numbers<[1], [0], [0], [1], [0, 0, 1, 1], [], []>} : vector<16x128xbf16>, vector<128x384xbf16>, vector<16x384xf32> -> vector<16x384xf32>
    %c0_13 = arith.constant 0 : index
    %c0_14 = arith.constant 0 : index
    %29 = vector.load %arg6[%c0_13, %c0_14] : memref<1x384xf32, #tpu.memory_space<vmem>>, vector<1x384xf32>
    %30 = vector.broadcast %29 : vector<1x384xf32> to vector<16x384xf32>
    %31 = arith.addf %28, %30 : vector<16x384xf32>
    %32 = vector.extract_strided_slice %31 {offsets = [0, 0], sizes = [16, 32], strides = [1, 1]} : vector<16x384xf32> to vector<16x32xf32>
    %33 = arith.truncf %32 : vector<16x32xf32> to vector<16x32xbf16>
    %c0_15 = arith.constant 0 : index
    %c0_16 = arith.constant 0 : index
    %c0_17 = arith.constant 0 : index
    %c0_18 = arith.constant 0 : index
    %34 = vector.load %arg7[%c0_15, %c0_16, %c0_17, %c0_18] : memref<1x4x16x32xbf16, #tpu.memory_space<vmem>>, vector<1x1x16x32xbf16>
    %35 = vector.shape_cast %34 : vector<1x1x16x32xbf16> to vector<16x32xbf16>
    %36 = vector.shape_cast %33 : vector<16x32xbf16> to vector<1x1x16x32xbf16>
    tpu.vector_store %arg7[%c0_15, %c0_16, %c0_17, %c0_18], %36 {strides = array<i32>} : memref<1x4x16x32xbf16, #tpu.memory_space<vmem>>, vector<1x1x16x32xbf16>,
    %37 = vector.extract_strided_slice %31 {offsets = [0, 128], sizes = [16, 32], strides = [1, 1]} : vector<16x384xf32> to vector<16x32xf32>
    %38 = arith.truncf %37 : vector<16x32xf32> to vector<16x32xbf16>
    %c0_19 = arith.constant 0 : index
    %c0_20 = arith.constant 0 : index
    %c0_21 = arith.constant 0 : index
    %c0_22 = arith.constant 0 : index
    %39 = vector.load %arg8[%c0_19, %c0_20, %c0_21, %c0_22] : memref<1x4x16x32xbf16, #tpu.memory_space<vmem>>, vector<1x1x16x32xbf16>
    %40 = vector.shape_cast %39 : vector<1x1x16x32xbf16> to vector<16x32xbf16>
    %41 = vector.shape_cast %38 : vector<16x32xbf16> to vector<1x1x16x32xbf16>
    tpu.vector_store %arg8[%c0_19, %c0_20, %c0_21, %c0_22], %41 {strides = array<i32>} : memref<1x4x16x32xbf16, #tpu.memory_space<vmem>>, vector<1x1x16x32xbf16>,
    %42 = vector.extract_strided_slice %31 {offsets = [0, 256], sizes = [16, 32], strides = [1, 1]} : vector<16x384xf32> to vector<16x32xf32>
    %43 = arith.truncf %42 : vector<16x32xf32> to vector<16x32xbf16>
    %c0_23 = arith.constant 0 : index
    %c0_24 = arith.constant 0 : index
    %c0_25 = arith.constant 0 : index
    %c0_26 = arith.constant 0 : index
    %44 = vector.load %arg9[%c0_23, %c0_24, %c0_25, %c0_26] : memref<1x4x16x32xbf16, #tpu.memory_space<vmem>>, vector<1x1x16x32xbf16>
    %45 = vector.shape_cast %44 : vector<1x1x16x32xbf16> to vector<16x32xbf16>
    %46 = vector.shape_cast %43 : vector<16x32xbf16> to vector<1x1x16x32xbf16>
    tpu.vector_store %arg9[%c0_23, %c0_24, %c0_25, %c0_26], %46 {strides = array<i32>} : memref<1x4x16x32xbf16, #tpu.memory_space<vmem>>, vector<1x1x16x32xbf16>,
    %47 = vector.extract_strided_slice %31 {offsets = [0, 32], sizes = [16, 32], strides = [1, 1]} : vector<16x384xf32> to vector<16x32xf32>
    %48 = arith.truncf %47 : vector<16x32xf32> to vector<16x32xbf16>
    %c0_27 = arith.constant 0 : index
    %c1 = arith.constant 1 : index
    %c0_28 = arith.constant 0 : index
    %c0_29 = arith.constant 0 : index
    %49 = vector.load %arg7[%c0_27, %c1, %c0_28, %c0_29] : memref<1x4x16x32xbf16, #tpu.memory_space<vmem>>, vector<1x1x16x32xbf16>
    %50 = vector.shape_cast %49 : vector<1x1x16x32xbf16> to vector<16x32xbf16>
    %51 = vector.shape_cast %48 : vector<16x32xbf16> to vector<1x1x16x32xbf16>
    tpu.vector_store %arg7[%c0_27, %c1, %c0_28, %c0_29], %51 {strides = array<i32>} : memref<1x4x16x32xbf16, #tpu.memory_space<vmem>>, vector<1x1x16x32xbf16>,
    %52 = vector.extract_strided_slice %31 {offsets = [0, 160], sizes = [16, 32], strides = [1, 1]} : vector<16x384xf32> to vector<16x32xf32>
    %53 = arith.truncf %52 : vector<16x32xf32> to vector<16x32xbf16>
    %c0_30 = arith.constant 0 : index
    %c1_31 = arith.constant 1 : index
    %c0_32 = arith.constant 0 : index
    %c0_33 = arith.constant 0 : index
    %54 = vector.load %arg8[%c0_30, %c1_31, %c0_32, %c0_33] : memref<1x4x16x32xbf16, #tpu.memory_space<vmem>>, vector<1x1x16x32xbf16>
    %55 = vector.shape_cast %54 : vector<1x1x16x32xbf16> to vector<16x32xbf16>
    %56 = vector.shape_cast %53 : vector<16x32xbf16> to vector<1x1x16x32xbf16>
    tpu.vector_store %arg8[%c0_30, %c1_31, %c0_32, %c0_33], %56 {strides = array<i32>} : memref<1x4x16x32xbf16, #tpu.memory_space<vmem>>, vector<1x1x16x32xbf16>,
    %57 = vector.extract_strided_slice %31 {offsets = [0, 288], sizes = [16, 32], strides = [1, 1]} : vector<16x384xf32> to vector<16x32xf32>
    %58 = arith.truncf %57 : vector<16x32xf32> to vector<16x32xbf16>
    %c0_34 = arith.constant 0 : index
    %c1_35 = arith.constant 1 : index
    %c0_36 = arith.constant 0 : index
    %c0_37 = arith.constant 0 : index
    %59 = vector.load %arg9[%c0_34, %c1_35, %c0_36, %c0_37] : memref<1x4x16x32xbf16, #tpu.memory_space<vmem>>, vector<1x1x16x32xbf16>
    %60 = vector.shape_cast %59 : vector<1x1x16x32xbf16> to vector<16x32xbf16>
    %61 = vector.shape_cast %58 : vector<16x32xbf16> to vector<1x1x16x32xbf16>
    tpu.vector_store %arg9[%c0_34, %c1_35, %c0_36, %c0_37], %61 {strides = array<i32>} : memref<1x4x16x32xbf16, #tpu.memory_space<vmem>>, vector<1x1x16x32xbf16>,
    %62 = vector.extract_strided_slice %31 {offsets = [0, 64], sizes = [16, 32], strides = [1, 1]} : vector<16x384xf32> to vector<16x32xf32>
    %63 = arith.truncf %62 : vector<16x32xf32> to vector<16x32xbf16>
    %c0_38 = arith.constant 0 : index
    %c2 = arith.constant 2 : index
    %c0_39 = arith.constant 0 : index
    %c0_40 = arith.constant 0 : index
    %64 = vector.load %arg7[%c0_38, %c2, %c0_39, %c0_40] : memref<1x4x16x32xbf16, #tpu.memory_space<vmem>>, vector<1x1x16x32xbf16>
    %65 = vector.shape_cast %64 : vector<1x1x16x32xbf16> to vector<16x32xbf16>
    %66 = vector.shape_cast %63 : vector<16x32xbf16> to vector<1x1x16x32xbf16>
    tpu.vector_store %arg7[%c0_38, %c2, %c0_39, %c0_40], %66 {strides = array<i32>} : memref<1x4x16x32xbf16, #tpu.memory_space<vmem>>, vector<1x1x16x32xbf16>,
    %67 = vector.extract_strided_slice %31 {offsets = [0, 192], sizes = [16, 32], strides = [1, 1]} : vector<16x384xf32> to vector<16x32xf32>
    %68 = arith.truncf %67 : vector<16x32xf32> to vector<16x32xbf16>
    %c0_41 = arith.constant 0 : index
    %c2_42 = arith.constant 2 : index
    %c0_43 = arith.constant 0 : index
    %c0_44 = arith.constant 0 : index
    %69 = vector.load %arg8[%c0_41, %c2_42, %c0_43, %c0_44] : memref<1x4x16x32xbf16, #tpu.memory_space<vmem>>, vector<1x1x16x32xbf16>
    %70 = vector.shape_cast %69 : vector<1x1x16x32xbf16> to vector<16x32xbf16>
    %71 = vector.shape_cast %68 : vector<16x32xbf16> to vector<1x1x16x32xbf16>
    tpu.vector_store %arg8[%c0_41, %c2_42, %c0_43, %c0_44], %71 {strides = array<i32>} : memref<1x4x16x32xbf16, #tpu.memory_space<vmem>>, vector<1x1x16x32xbf16>,
    %72 = vector.extract_strided_slice %31 {offsets = [0, 320], sizes = [16, 32], strides = [1, 1]} : vector<16x384xf32> to vector<16x32xf32>
    %73 = arith.truncf %72 : vector<16x32xf32> to vector<16x32xbf16>
    %c0_45 = arith.constant 0 : index
    %c2_46 = arith.constant 2 : index
    %c0_47 = arith.constant 0 : index
    %c0_48 = arith.constant 0 : index
    %74 = vector.load %arg9[%c0_45, %c2_46, %c0_47, %c0_48] : memref<1x4x16x32xbf16, #tpu.memory_space<vmem>>, vector<1x1x16x32xbf16>
    %75 = vector.shape_cast %74 : vector<1x1x16x32xbf16> to vector<16x32xbf16>
    %76 = vector.shape_cast %73 : vector<16x32xbf16> to vector<1x1x16x32xbf16>
    tpu.vector_store %arg9[%c0_45, %c2_46, %c0_47, %c0_48], %76 {strides = array<i32>} : memref<1x4x16x32xbf16, #tpu.memory_space<vmem>>, vector<1x1x16x32xbf16>,
    %77 = vector.extract_strided_slice %31 {offsets = [0, 96], sizes = [16, 32], strides = [1, 1]} : vector<16x384xf32> to vector<16x32xf32>
    %78 = arith.truncf %77 : vector<16x32xf32> to vector<16x32xbf16>
    %c0_49 = arith.constant 0 : index
    %c3 = arith.constant 3 : index
    %c0_50 = arith.constant 0 : index
    %c0_51 = arith.constant 0 : index
    %79 = vector.load %arg7[%c0_49, %c3, %c0_50, %c0_51] : memref<1x4x16x32xbf16, #tpu.memory_space<vmem>>, vector<1x1x16x32xbf16>
    %80 = vector.shape_cast %79 : vector<1x1x16x32xbf16> to vector<16x32xbf16>
    %81 = vector.shape_cast %78 : vector<16x32xbf16> to vector<1x1x16x32xbf16>
    tpu.vector_store %arg7[%c0_49, %c3, %c0_50, %c0_51], %81 {strides = array<i32>} : memref<1x4x16x32xbf16, #tpu.memory_space<vmem>>, vector<1x1x16x32xbf16>,
    %82 = vector.extract_strided_slice %31 {offsets = [0, 224], sizes = [16, 32], strides = [1, 1]} : vector<16x384xf32> to vector<16x32xf32>
    %83 = arith.truncf %82 : vector<16x32xf32> to vector<16x32xbf16>
    %c0_52 = arith.constant 0 : index
    %c3_53 = arith.constant 3 : index
    %c0_54 = arith.constant 0 : index
    %c0_55 = arith.constant 0 : index
    %84 = vector.load %arg8[%c0_52, %c3_53, %c0_54, %c0_55] : memref<1x4x16x32xbf16, #tpu.memory_space<vmem>>, vector<1x1x16x32xbf16>
    %85 = vector.shape_cast %84 : vector<1x1x16x32xbf16> to vector<16x32xbf16>
    %86 = vector.shape_cast %83 : vector<16x32xbf16> to vector<1x1x16x32xbf16>
    tpu.vector_store %arg8[%c0_52, %c3_53, %c0_54, %c0_55], %86 {strides = array<i32>} : memref<1x4x16x32xbf16, #tpu.memory_space<vmem>>, vector<1x1x16x32xbf16>,
    %87 = vector.extract_strided_slice %31 {offsets = [0, 352], sizes = [16, 32], strides = [1, 1]} : vector<16x384xf32> to vector<16x32xf32>
    %88 = arith.truncf %87 : vector<16x32xf32> to vector<16x32xbf16>
    %c0_56 = arith.constant 0 : index
    %c3_57 = arith.constant 3 : index
    %c0_58 = arith.constant 0 : index
    %c0_59 = arith.constant 0 : index
    %89 = vector.load %arg9[%c0_56, %c3_57, %c0_58, %c0_59] : memref<1x4x16x32xbf16, #tpu.memory_space<vmem>>, vector<1x1x16x32xbf16>
    %90 = vector.shape_cast %89 : vector<1x1x16x32xbf16> to vector<16x32xbf16>
    %91 = vector.shape_cast %88 : vector<16x32xbf16> to vector<1x1x16x32xbf16>
    tpu.vector_store %arg9[%c0_56, %c3_57, %c0_58, %c0_59], %91 {strides = array<i32>} : memref<1x4x16x32xbf16, #tpu.memory_space<vmem>>, vector<1x1x16x32xbf16>,
    return
  }
  func.func @transform_0(%arg0: i32, %arg1: i32) -> (i32, i32, i32) {
    %c0_i32 = arith.constant 0 : i32
    %c0_i32_0 = arith.constant 0 : i32
    return %arg0, %arg1, %c0_i32 : i32, i32, i32
  }
  func.func @transform_1(%arg0: i32, %arg1: i32) -> (i32, i32) {
    %c0_i32 = arith.constant 0 : i32
    %c0_i32_0 = arith.constant 0 : i32
    %c0_i32_1 = arith.constant 0 : i32
    return %c0_i32, %c0_i32_0 : i32, i32
  }
  func.func @transform_2(%arg0: i32, %arg1: i32) -> (i32, i32) {
    %c0_i32 = arith.constant 0 : i32
    %c0_i32_0 = arith.constant 0 : i32
    %c0_i32_1 = arith.constant 0 : i32
    return %c0_i32, %c0_i32_0 : i32, i32
  }
  func.func @transform_3(%arg0: i32, %arg1: i32) -> (i32, i32) {
    %c0_i32 = arith.constant 0 : i32
    %c0_i32_0 = arith.constant 0 : i32
    %c0_i32_1 = arith.constant 0 : i32
    return %c0_i32, %c0_i32_0 : i32, i32
  }
  func.func @transform_4(%arg0: i32, %arg1: i32) -> (i32, i32) {
    %c0_i32 = arith.constant 0 : i32
    %c0_i32_0 = arith.constant 0 : i32
    %c0_i32_1 = arith.constant 0 : i32
    return %c0_i32, %c0_i32_0 : i32, i32
  }
  func.func @transform_5(%arg0: i32, %arg1: i32) -> (i32, i32, i32, i32) {
    %c0_i32 = arith.constant 0 : i32
    %c0_i32_0 = arith.constant 0 : i32
    %c0_i32_1 = arith.constant 0 : i32
    return %arg0, %c0_i32, %arg1, %c0_i32_0 : i32, i32, i32, i32
  }
  func.func @transform_6(%arg0: i32, %arg1: i32) -> (i32, i32, i32, i32) {
    %c0_i32 = arith.constant 0 : i32
    %c0_i32_0 = arith.constant 0 : i32
    %c0_i32_1 = arith.constant 0 : i32
    return %arg0, %c0_i32, %arg1, %c0_i32_0 : i32, i32, i32, i32
  }
  func.func @transform_7(%arg0: i32, %arg1: i32) -> (i32, i32, i32, i32) {
    %c0_i32 = arith.constant 0 : i32
    %c0_i32_0 = arith.constant 0 : i32
    %c0_i32_1 = arith.constant 0 : i32
    return %arg0, %c0_i32, %arg1, %c0_i32_0 : i32, i32, i32, i32
  }
}

</mosaic_0001>

<llo_original>
// kernel: tpu_custom_call.1
$region0: #{tpu_custom_call.1}
  #allocation0 [shape = 'u32[]', space=smem, size = 0x4, offset = 0x4, fixed_abs, tag = 'smem constant byte address 0x4 - core index']
  #allocation1 [shape = 'u32[72,128]{1,0:T(1,128)}', space=vmem, size = 0x9000, scoped, tag = 'internal scratch']
  #allocation14 [shape = 's32[]', space=sflag, size = 0x4, offset = 0, fixed_abs, tag = 'sflag constant byte address 0x0 - dummy sync flag']
  #allocation16 [shape = 's32[]', space=sflag, size = 0x4, offset = 0, fixed_abs, tag = 'sflag constant byte address 0x0 - dummy sync flag']
  #allocation18 [shape = 's32[]', space=sflag, size = 0x4, offset = 0, fixed_abs, tag = 'sflag constant byte address 0x0 - dummy sync flag']
  %s0 = inlined_call_operand.hbm [shape: f32[2,32,128], index: 0, kind: input, shape index: {}]
  %s1 = inlined_call_operand.hbm [shape: f32[1,128], index: 1, kind: input, shape index: {}]
  %s2 = inlined_call_operand.hbm [shape: f32[1,128], index: 2, kind: input, shape index: {}]
  %s3 = inlined_call_operand.hbm [shape: bf16[128,384], index: 3, kind: input, shape index: {}]
  %s4 = inlined_call_operand.vmem [shape: f32[1,384], index: 4, kind: input, shape index: {}]
  %s5 = inlined_call_operand.hbm [shape: bf16[2,4,32,32], index: 5, kind: output, shape index: {0}]
  %s6 = inlined_call_operand.hbm [shape: bf16[2,4,32,32], index: 6, kind: output, shape index: {1}]
  %s7 = inlined_call_operand.hbm [shape: bf16[2,4,32,32], index: 7, kind: output, shape index: {2}]
  %8 = xla_tuple %s5, %s6, %s7
  %s9 = sld [smem:[#allocation0]]
  $region85: #{tpu_custom_call.1} parent=0
    _
  %s11 = ssub.s32 1, %s9
  %s12 = scalar_select 0, %s11, %s9
  $region1: #{tpu_custom_call.1} parent=0
    #allocation2 [shape = 'u8[16384]{0}', space=vmem, size = 0x4000, scoped, tag = 'input window, operand 0']
    #allocation3 [shape = 's32[2]{0}', space=sflag, size = 0x8, scoped, tag = 'scoped memory for tpu_custom_call.1']
    #allocation4 [shape = 's32[2]{0}', space=sflag, size = 0x8, scoped, tag = 'scoped memory for tpu_custom_call.1']
    #allocation5 [shape = 'u8[512]{0}', space=vmem, size = 0x400, scoped, tag = 'input window, operand 1, single buffered']
    #allocation6 [shape = 's32[1]{0}', space=sflag, size = 0x4, scoped, tag = 'scoped memory for tpu_custom_call.1']
    #allocation7 [shape = 'u8[512]{0}', space=vmem, size = 0x400, scoped, tag = 'input window, operand 2, single buffered']
    #allocation8 [shape = 'u8[98304]{0}', space=vmem, size = 0x18000, scoped, tag = 'input window, operand 3, single buffered']
    #allocation9 [shape = 's32[1]{0}', space=sflag, size = 0x4, scoped, tag = 'scoped memory for tpu_custom_call.1']
    #allocation10 [shape = 'u8[32768]{0}', space=vmem, size = 0x8000, scoped, tag = 'output window, operand 0']
    #allocation11 [shape = 'u8[32768]{0}', space=vmem, size = 0x8000, scoped, tag = 'output window, operand 1']
    #allocation12 [shape = 's32[2]{0}', space=sflag, size = 0x8, scoped, tag = 'scoped memory for tpu_custom_call.1']
    #allocation13 [shape = 'u8[32768]{0}', space=vmem, size = 0x8000, scoped, tag = 'output window, operand 2']
    %13 = vsyncpa [#allocation3], 0
    %s14 = scalar_lea.sflag [#allocation3], 1
    %15 = vsyncpa %s14, 0
    %16 = vsyncpa [#allocation6], 0
    %17 = vsyncpa [#allocation9], 0
    %18 = vsyncpa [#allocation4], 0
    %s19 = scalar_lea.sflag [#allocation4], 1
    %20 = vsyncpa %s19, 0
    %21 = vsyncpa [#allocation12], 0
    %s22 = scalar_lea.sflag [#allocation12], 1
    %23 = vsyncpa %s22, 0
    loop: start=0, step=1, limit=6
    $region2: #{tpu_custom_call.1} parent=1 // loop_pre_header
      _
    $region3: #{tpu_custom_call.1} parent=1 // loop_header
      %s25 = sphi 0, %s29
      %p26 = scmp.ge.s32.totalorder %s25, 6
      %s32 = sphi 0, %s44
      %s33 = sphi 0, %s40
      %s34 = sphi 0, %s32
      %s35 = sphi 0, %s33
      %s36 = sphi 0, %s34
      %s37 = sphi 0, %s35
      %s49 = sphi 0, %s51
      %s52 = sphi 0, %s49
      %s53 = sphi 0, %s52
      %s69 = sphi 0, %s53
      %s73 = sphi 0, %s73
      %s75 = sphi 0, %s73
      %s76 = sphi 0, %s75
      %s90 = sphi 0, %s76
      %s94 = sphi 0, %s94
      %s96 = sphi 0, %s94
      %s97 = sphi 0, %s96
      %s111 = sphi 0, %s97
      %s115 = sphi 0, %s115
      %s117 = sphi 0, %s115
      %s118 = sphi 0, %s117
      %s132 = sphi 0, %s118
      %s136 = sphi 0, %s136
      %s138 = sphi 0, %s136
      %s139 = sphi 0, %s138
      %s153 = sphi 0, %s139
      %s161 = sphi 0, %s163
      %s164 = sphi 0, %s161
      %s165 = sphi 0, %s164
      %s181 = sphi 0, %s165
      %s189 = sphi 0, %s191
      %s192 = sphi 0, %s189
      %s193 = sphi 0, %s192
      %s209 = sphi 0, %s193
      %s217 = sphi 0, %s219
      %s220 = sphi 0, %s217
      %s221 = sphi 0, %s220
      %s237 = sphi 0, %s221
    $region4: #{tpu_custom_call.1} parent=1 // loop_header_branch
      %28 = sbr.rel (%p26) target = $region8
    $region5: #{tpu_custom_call.1} parent=1 // loop_body
      %s30 = ssub.s32 %s25, 1
      %s31 = ssub.s32 %s25, 2
      %s38 = sadd.s32 1, %s33
      %p39 = scmp.ge.s32.totalorder %s38, 2
      %s40 = scalar_select %p39, 0, %s38
      %s41 = sadd.s32 1, %s32
      %s42 = scalar_select %p39, %s41, %s32
      %p43 = scmp.ge.s32.totalorder %s42, 2
      %s44 = scalar_select %p43, 0, %s42
      %s45 = ssub.s32 %s32, %s44
      %s46 = ssub.s32 %s33, %s40
      %s47 = sor.u32 %s45, %s46
      %p48 = scmp.eq.s32.totalorder %s47, 0
      %s50 = sadd.s32 %s49, 1
      %s51 = scalar_select %p48, %s49, %s50
      %p54 = pneg %p48
      %p55 = scmp.eq.s32.totalorder %s25, 3
      %p56 = por %p54, %p55
      %p57 = scmp.ne.s32.totalorder %s49, %s52
      %p58 = scmp.eq.s32.totalorder %s25, 0
      %p59 = por %p57, %p58
      %p60 = scmp.ne.s32.totalorder %s49, %s52
      %p61 = scmp.eq.s32.totalorder %s30, 3
      %p62 = por %p60, %p61
      %p63 = scmp.ne.s32.totalorder %s52, %s53
      %p64 = scmp.eq.s32.totalorder %s30, 0
      %p65 = por %p63, %p64
      %p66 = scmp.ne.s32.totalorder %s52, %s53
      %p67 = scmp.eq.s32.totalorder %s31, 3
      %p68 = por %p66, %p67
      %p70 = scmp.ne.s32.totalorder %s53, %s69
      %p71 = scmp.eq.s32.totalorder %s31, 0
      %p72 = por %p70, %p71
      %s74 = sadd.s32 %s73, 1
      %p77 = scmp.eq.s32.totalorder %s25, 3
      %p78 = scmp.ne.s32.totalorder %s73, %s75
      %p79 = scmp.eq.s32.totalorder %s25, 0
      %p80 = por %p78, %p79
      %p81 = scmp.ne.s32.totalorder %s73, %s75
      %p82 = scmp.eq.s32.totalorder %s30, 3
      %p83 = por %p81, %p82
      %p84 = scmp.ne.s32.totalorder %s75, %s76
      %p85 = scmp.eq.s32.totalorder %s30, 0
      %p86 = por %p84, %p85
      %p87 = scmp.ne.s32.totalorder %s75, %s76
      %p88 = scmp.eq.s32.totalorder %s31, 3
      %p89 = por %p87, %p88
      %p91 = scmp.ne.s32.totalorder %s76, %s90
      %p92 = scmp.eq.s32.totalorder %s31, 0
      %p93 = por %p91, %p92
      %s95 = sadd.s32 %s94, 1
      %p98 = scmp.eq.s32.totalorder %s25, 3
      %p99 = scmp.ne.s32.totalorder %s94, %s96
      %p100 = scmp.eq.s32.totalorder %s25, 0
      %p101 = por %p99, %p100
      %p102 = scmp.ne.s32.totalorder %s94, %s96
      %p103 = scmp.eq.s32.totalorder %s30, 3
      %p104 = por %p102, %p103
      %p105 = scmp.ne.s32.totalorder %s96, %s97
      %p106 = scmp.eq.s32.totalorder %s30, 0
      %p107 = por %p105, %p106
      %p108 = scmp.ne.s32.totalorder %s96, %s97
      %p109 = scmp.eq.s32.totalorder %s31, 3
      %p110 = por %p108, %p109
      %p112 = scmp.ne.s32.totalorder %s97, %s111
      %p113 = scmp.eq.s32.totalorder %s31, 0
      %p114 = por %p112, %p113
      %s116 = sadd.s32 %s115, 1
      %p119 = scmp.eq.s32.totalorder %s25, 3
      %p120 = scmp.ne.s32.totalorder %s115, %s117
      %p121 = scmp.eq.s32.totalorder %s25, 0
      %p122 = por %p120, %p121
      %p123 = scmp.ne.s32.totalorder %s115, %s117
      %p124 = scmp.eq.s32.totalorder %s30, 3
      %p125 = por %p123, %p124
      %p126 = scmp.ne.s32.totalorder %s117, %s118
      %p127 = scmp.eq.s32.totalorder %s30, 0
      %p128 = por %p126, %p127
      %p129 = scmp.ne.s32.totalorder %s117, %s118
      %p130 = scmp.eq.s32.totalorder %s31, 3
      %p131 = por %p129, %p130
      %p133 = scmp.ne.s32.totalorder %s118, %s132
      %p134 = scmp.eq.s32.totalorder %s31, 0
      %p135 = por %p133, %p134
      %s137 = sadd.s32 %s136, 1
      %p140 = scmp.eq.s32.totalorder %s25, 3
      %p141 = scmp.ne.s32.totalorder %s136, %s138
      %p142 = scmp.eq.s32.totalorder %s25, 0
      %p143 = por %p141, %p142
      %p144 = scmp.ne.s32.totalorder %s136, %s138
      %p145 = scmp.eq.s32.totalorder %s30, 3
      %p146 = por %p144, %p145
      %p147 = scmp.ne.s32.totalorder %s138, %s139
      %p148 = scmp.eq.s32.totalorder %s30, 0
      %p149 = por %p147, %p148
      %p150 = scmp.ne.s32.totalorder %s138, %s139
      %p151 = scmp.eq.s32.totalorder %s31, 3
      %p152 = por %p150, %p151
      %p154 = scmp.ne.s32.totalorder %s139, %s153
      %p155 = scmp.eq.s32.totalorder %s31, 0
      %p156 = por %p154, %p155
      %s157 = ssub.s32 %s32, %s44
      %s158 = ssub.s32 %s33, %s40
      %s159 = sor.u32 %s157, %s158
      %p160 = scmp.eq.s32.totalorder %s159, 0
      %s162 = sadd.s32 %s161, 1
      %s163 = scalar_select %p160, %s161, %s162
      %p166 = pneg %p160
      %p167 = scmp.eq.s32.totalorder %s25, 3
      %p168 = por %p166, %p167
      %p169 = scmp.ne.s32.totalorder %s161, %s164
      %p170 = scmp.eq.s32.totalorder %s25, 0
      %p171 = por %p169, %p170
      %p172 = scmp.ne.s32.totalorder %s161, %s164
      %p173 = scmp.eq.s32.totalorder %s30, 3
      %p174 = por %p172, %p173
      %p175 = scmp.ne.s32.totalorder %s164, %s165
      %p176 = scmp.eq.s32.totalorder %s30, 0
      %p177 = por %p175, %p176
      %p178 = scmp.ne.s32.totalorder %s164, %s165
      %p179 = scmp.eq.s32.totalorder %s31, 3
      %p180 = por %p178, %p179
      %p182 = scmp.ne.s32.totalorder %s165, %s181
      %p183 = scmp.eq.s32.totalorder %s31, 0
      %p184 = por %p182, %p183
      %s185 = ssub.s32 %s32, %s44
      %s186 = ssub.s32 %s33, %s40
      %s187 = sor.u32 %s185, %s186
      %p188 = scmp.eq.s32.totalorder %s187, 0
      %s190 = sadd.s32 %s189, 1
      %s191 = scalar_select %p188, %s189, %s190
      %p194 = pneg %p188
      %p195 = scmp.eq.s32.totalorder %s25, 3
      %p196 = por %p194, %p195
      %p197 = scmp.ne.s32.totalorder %s189, %s192
      %p198 = scmp.eq.s32.totalorder %s25, 0
      %p199 = por %p197, %p198
      %p200 = scmp.ne.s32.totalorder %s189, %s192
      %p201 = scmp.eq.s32.totalorder %s30, 3
      %p202 = por %p200, %p201
      %p203 = scmp.ne.s32.totalorder %s192, %s193
      %p204 = scmp.eq.s32.totalorder %s30, 0
      %p205 = por %p203, %p204
      %p206 = scmp.ne.s32.totalorder %s192, %s193
      %p207 = scmp.eq.s32.totalorder %s31, 3
      %p208 = por %p206, %p207
      %p210 = scmp.ne.s32.totalorder %s193, %s209
      %p211 = scmp.eq.s32.totalorder %s31, 0
      %p212 = por %p210, %p211
      %s213 = ssub.s32 %s32, %s44
      %s214 = ssub.s32 %s33, %s40
      %s215 = sor.u32 %s213, %s214
      %p216 = scmp.eq.s32.totalorder %s215, 0
      %s218 = sadd.s32 %s217, 1
      %s219 = scalar_select %p216, %s217, %s218
      %p222 = pneg %p216
      %p223 = scmp.eq.s32.totalorder %s25, 3
      %p224 = por %p222, %p223
      %p225 = scmp.ne.s32.totalorder %s217, %s220
      %p226 = scmp.eq.s32.totalorder %s25, 0
      %p227 = por %p225, %p226
      %p228 = scmp.ne.s32.totalorder %s217, %s220
      %p229 = scmp.eq.s32.totalorder %s30, 3
      %p230 = por %p228, %p229
      %p231 = scmp.ne.s32.totalorder %s220, %s221
      %p232 = scmp.eq.s32.totalorder %s30, 0
      %p233 = por %p231, %p232
      %p234 = scmp.ne.s32.totalorder %s220, %s221
      %p235 = scmp.eq.s32.totalorder %s31, 3
      %p236 = por %p234, %p235
      %p238 = scmp.ne.s32.totalorder %s221, %s237
      %p239 = scmp.eq.s32.totalorder %s31, 0
      %p240 = por %p238, %p239
      %p241 = scmp.le.s32.totalorder 1, %s25
      %p242 = scmp.lt.s32.totalorder %s25, 5
      %p243 = pnand %p241, %p242
      %p244 = pneg %p243
      // Predicated region
      $region9: #{tpu_custom_call.1} parent=5 // pred_check
        _
      $region10: #{tpu_custom_call.1} parent=5 // pred_check_branch
        %246 = sbr.rel (%p243) target = $region12
      $region11: #{tpu_custom_call.1} parent=5 // pred_region
        %s247 = ssub.s32 %s25, 1
        // Predicated region
        $region13: #{tpu_custom_call.1} parent=11 // pred_check
          %p248 = pneg %p86
        $region14: #{tpu_custom_call.1} parent=11 // pred_check_branch
          %250 = sbr.rel (%p248) target = $region16
        $region15: #{tpu_custom_call.1} parent=11 // pred_region
          %252 = vsyncadd [#allocation6], 0
          %s254 = sshll.u32 %s1, 4
          %s255 = int_to_ptr.hbm [resolvable:$true] %s254
          %s256 = sshll.u32 [#allocation5], 4
          %s257 = int_to_ptr.vmem [resolvable:$true] %s256
          %259 = dma.hbm_to_vmem [thread:$0]  %s255, 16, %s257, [#allocation6]
        $region16: #{tpu_custom_call.1} parent=11 // pred_fallthru
          _
        // Predicated region
        $region17: #{tpu_custom_call.1} parent=11 // pred_check
          %p260 = pneg %p107
        $region18: #{tpu_custom_call.1} parent=11 // pred_check_branch
          %262 = sbr.rel (%p260) target = $region20
        $region19: #{tpu_custom_call.1} parent=11 // pred_region
          %264 = vsyncadd [#allocation6], 0
          %s266 = sshll.u32 %s2, 4
          %s267 = int_to_ptr.hbm [resolvable:$true] %s266
          %s268 = sshll.u32 [#allocation7], 4
          %s269 = int_to_ptr.vmem [resolvable:$true] %s268
          %271 = dma.hbm_to_vmem [thread:$0]  %s267, 16, %s269, [#allocation6]
        $region20: #{tpu_custom_call.1} parent=11 // pred_fallthru
          _
        // Predicated region
        $region21: #{tpu_custom_call.1} parent=11 // pred_check
          %p272 = pneg %p128
        $region22: #{tpu_custom_call.1} parent=11 // pred_check_branch
          %274 = sbr.rel (%p272) target = $region24
        $region23: #{tpu_custom_call.1} parent=11 // pred_region
          %276 = vsyncadd [#allocation9], 0
          %s277 = sshll.u32 %s3, 4
          %s278 = int_to_ptr.hbm [resolvable:$true] %s277
          %s279 = sshll.u32 [#allocation8], 4
          %s280 = int_to_ptr.vmem [resolvable:$true] %s279
          %285 = dma.hbm_to_vmem [thread:$0]  %s278, 3072, %s280, [#allocation9], 192, 192, 12
        $region24: #{tpu_custom_call.1} parent=11 // pred_fallthru
          _
        // Predicated region
        $region25: #{tpu_custom_call.1} parent=11 // pred_check
          %p286 = pneg %p149
        $region26: #{tpu_custom_call.1} parent=11 // pred_check_branch
          %288 = sbr.rel (%p286) target = $region28
        $region27: #{tpu_custom_call.1} parent=11 // pred_region
          _
        $region28: #{tpu_custom_call.1} parent=11 // pred_fallthru
          _
      $region12: #{tpu_custom_call.1} parent=5 // pred_fallthru
        _
      %p289 = scmp.lt.s32.totalorder %s25, 4
      // Predicated region
      $region29: #{tpu_custom_call.1} parent=5 // pred_check
        %p290 = pneg %p289
      $region30: #{tpu_custom_call.1} parent=5 // pred_check_branch
        %292 = sbr.rel (%p290) target = $region32
      $region31: #{tpu_custom_call.1} parent=5 // pred_region
        // Predicated region
        $region33: #{tpu_custom_call.1} parent=31 // pred_check
          %p293 = pneg %p59
        $region34: #{tpu_custom_call.1} parent=31 // pred_check_branch
          %295 = sbr.rel (%p293) target = $region36
        $region35: #{tpu_custom_call.1} parent=31 // pred_region
          %s296 = sand.u32 %s49, 1
          %s297 = scalar_lea.sflag [#allocation3], %s296
          %s298 = sand.u32 %s49, 1
          %s299 = smul.addr %s298, 16
          %s300 = scalar_lea.vmem [#allocation2], %s299
          %s301 = smul.u32 2, %s33
          %303 = vsyncadd %s297, 0
          %s304 = smul.addr %s32, 4
          %s305 = sadd.s32 %s301, %s304
          %s306 = smul.addr %s305, 8
          %s307 = scalar_lea.hbm %s0, %s306
          %s308 = sshll.u32 %s307, 4
          %s309 = int_to_ptr.hbm [resolvable:$true] %s308
          %s310 = sshll.u32 %s300, 4
          %s311 = int_to_ptr.vmem [resolvable:$true] %s310
          %316 = dma.hbm_to_vmem [thread:$0]  %s309, 256, %s311, %s297, 128, 128, 8
        $region36: #{tpu_custom_call.1} parent=31 // pred_fallthru
          _
      $region32: #{tpu_custom_call.1} parent=5 // pred_fallthru
        _
      %p317 = scmp.le.s32.totalorder 1, %s25
      %p318 = scmp.lt.s32.totalorder %s25, 5
      %p319 = pnand %p317, %p318
      %p320 = pneg %p319
      // Predicated region
      $region37: #{tpu_custom_call.1} parent=5 // pred_check
        _
      $region38: #{tpu_custom_call.1} parent=5 // pred_check_branch
        %322 = sbr.rel (%p319) target = $region40
      $region39: #{tpu_custom_call.1} parent=5 // pred_region
        %s323 = ssub.s32 %s25, 1
        %s324 = sand.u32 %s52, 1
        %s325 = scalar_lea.sflag [#allocation3], %s324
        %s326 = sand.u32 %s52, 1
        %s327 = smul.addr %s326, 16
        %s328 = scalar_lea.vmem [#allocation2], %s327
        // Predicated region
        $region41: #{tpu_custom_call.1} parent=39 // pred_check
          %p329 = pneg %p65
        $region42: #{tpu_custom_call.1} parent=39 // pred_check_branch
          %331 = sbr.rel (%p329) target = $region44
        $region43: #{tpu_custom_call.1} parent=39 // pred_region
          %333 = dma.done %s325, 256
        $region44: #{tpu_custom_call.1} parent=39 // pred_fallthru
          _
        // Predicated region
        $region45: #{tpu_custom_call.1} parent=39 // pred_check
          %p334 = pneg %p86
        $region46: #{tpu_custom_call.1} parent=39 // pred_check_branch
          %336 = sbr.rel (%p334) target = $region48
        $region47: #{tpu_custom_call.1} parent=39 // pred_region
          %338 = dma.done [#allocation6], 16
        $region48: #{tpu_custom_call.1} parent=39 // pred_fallthru
          _
        // Predicated region
        $region49: #{tpu_custom_call.1} parent=39 // pred_check
          %p339 = pneg %p107
        $region50: #{tpu_custom_call.1} parent=39 // pred_check_branch
          %341 = sbr.rel (%p339) target = $region52
        $region51: #{tpu_custom_call.1} parent=39 // pred_region
          %343 = dma.done [#allocation6], 16
        $region52: #{tpu_custom_call.1} parent=39 // pred_fallthru
          _
        // Predicated region
        $region53: #{tpu_custom_call.1} parent=39 // pred_check
          %p344 = pneg %p128
        $region54: #{tpu_custom_call.1} parent=39 // pred_check_branch
          %346 = sbr.rel (%p344) target = $region56
        $region55: #{tpu_custom_call.1} parent=39 // pred_region
          %348 = dma.done [#allocation9], 3072
        $region56: #{tpu_custom_call.1} parent=39 // pred_fallthru
          _
        %s349 = sand.u32 %s52, 1
        %s350 = scalar_lea.sflag [#allocation3], %s349
        %s351 = sand.u32 %s52, 1
        %s352 = smul.addr %s351, 16
        %s353 = scalar_lea.vmem [#allocation2], %s352
        %p354 = pneg %p65
        %p355 = pneg %p62
        %p356 = pneg %p86
        %p357 = pneg %p83
        %p358 = pneg %p107
        %p359 = pneg %p104
        %p360 = pneg %p128
        %p361 = pneg %p125
        %p362 = pneg %p149
        %p363 = pneg %p146
        %p364 = pneg %p177
        %p365 = pneg %p174
        %s366 = sand.u32 %s164, 1
        %s367 = scalar_lea.sflag [#allocation4], %s366
        %s368 = sand.u32 %s164, 1
        %s369 = smul.addr %s368, 32
        %s370 = scalar_lea.vmem [#allocation10], %s369
        %p371 = pneg %p205
        %p372 = pneg %p202
        %s373 = sand.u32 %s30, 1
        %s374 = scalar_lea.sflag [#allocation12], %s373
        %s375 = sand.u32 %s192, 1
        %s376 = smul.addr %s375, 32
        %s377 = scalar_lea.vmem [#allocation11], %s376
        %p378 = pneg %p233
        %p379 = pneg %p230
        %s380 = sand.u32 %s30, 1
        %s381 = scalar_lea.sflag [#allocation12], %s380
        %s382 = sand.u32 %s220, 1
        %s383 = smul.addr %s382, 32
        %s384 = scalar_lea.vmem [#allocation13], %s383
        %s385 = smul.u32 2, %s35
        %s386 = smul.u32 2, %s35
        %s387 = smul.u32 2, %s35
        %s388 = smul.u32 2, %s35
        %v389 = vld [vmem:[%s328] sm:$0xff]
        %v390 = vld [vmem:[%s328 + $0x8] sm:$0xff]
        %v391 = vld [vmem:[#allocation5] sm:$0x1]
        %v392 = vld [vmem:[#allocation7] sm:$0x1]
        %393 = vadd.xlane.f32.xlu0 %v389
        %v394 = vpop.xlane.xlu0 %393
        %395 = vadd.xlane.f32.xlu0 %v390
        %v396 = vpop.xlane.xlu0 %395
        %v397 = vrcp.pop 128.0
        %v398 = vmul.f32 128.0, %v397
        %v399 = vsub.f32 1.0, %v398
        %v400 = vmul.f32 %v397, %v399
        %v401 = vadd.f32 %v397, %v400
        %vm402 = vweird.f32 %v397
        %v403 = vsel %vm402, %v397, %v401
        %v404 = vmul.f32 %v394, %v403
        %v405 = vmul.f32 %v396, %v403
        %v406 = vsub.f32 %v389, %v404
        %v407 = vsub.f32 %v390, %v405
        %v408 = vmul.f32 %v406, %v406
        %v409 = vmul.f32 %v407, %v407
        %410 = vadd.xlane.f32.xlu0 %v408
        %v411 = vpop.xlane.xlu0 %410
        %412 = vadd.xlane.f32.xlu0 %v409
        %v413 = vpop.xlane.xlu0 %412
        %v414 = vmul.f32 %v411, %v403
        %v415 = vmul.f32 %v413, %v403
        %v416 = vadd.f32 %v414, 1e-05
        %v417 = vadd.f32 %v415, 1e-05
        %v418 = vrsqrt.pop %v416
        %v419 = vmul.f32 %v418, %v416
        %v420 = vmul.f32 %v419, %v418
        %v421 = vmul.f32 0.5, %v420
        %v422 = vsub.f32 1.5, %v421
        %v423 = vmul.f32 %v418, %v422
        %vm424 = vweird.f32 %v416
        %vm425 = vweird.f32 %v418
        %vm426 = vmor %vm424, %vm425
        %v427 = vsel %vm426, %v418, %v423
        %v428 = vrsqrt.pop %v417
        %v429 = vmul.f32 %v428, %v417
        %v430 = vmul.f32 %v429, %v428
        %v431 = vmul.f32 0.5, %v430
        %v432 = vsub.f32 1.5, %v431
        %v433 = vmul.f32 %v428, %v432
        %vm434 = vweird.f32 %v417
        %vm435 = vweird.f32 %v428
        %vm436 = vmor %vm434, %vm435
        %v437 = vsel %vm436, %v428, %v433
        %v438 = vmul.f32 %v406, %v427
        %v439 = vmul.f32 %v407, %v437
        %v441 = vperm.slane %v391, 0
        %v443 = vmul.f32 %v438, %v441
        %v444 = vmul.f32 %v439, %v441
        %v446 = vperm.slane %v392, 0
        %v448 = vadd.f32 %v443, %v446
        %v449 = vadd.f32 %v444, %v446
        %v450 = vpack.c.bf16 %v449, %v448
        %v451 = vld [vmem:[#allocation8] sm:$0xff]
        %v452 = vld [vmem:[#allocation8 + $0x8] sm:$0xf]
        %v453 = vld [vmem:[#allocation8 + $0xc] sm:$0xff]
        %v454 = vld [vmem:[#allocation8 + $0x14] sm:$0xf]
        %v455 = vld [vmem:[#allocation8 + $0x18] sm:$0xff]
        %v456 = vld [vmem:[#allocation8 + $0x20] sm:$0xf]
        %v457 = vld [vmem:[#allocation8 + $0x24] sm:$0xff]
        %v458 = vld [vmem:[#allocation8 + $0x2c] sm:$0xf]
        %v459 = vld [vmem:[#allocation8 + $0x30] sm:$0xff]
        %v460 = vld [vmem:[#allocation8 + $0x38] sm:$0xf]
        %v461 = vld [vmem:[#allocation8 + $0x3c] sm:$0xff]
        %v462 = vld [vmem:[#allocation8 + $0x44] sm:$0xf]
        %v463 = vld [vmem:[#allocation8 + $0x48] sm:$0xff]
        %v464 = vld [vmem:[#allocation8 + $0x50] sm:$0xf]
        %v465 = vld [vmem:[#allocation8 + $0x54] sm:$0xff]
        %v466 = vld [vmem:[#allocation8 + $0x5c] sm:$0xf]
        %v467 = vld [vmem:[#allocation8 + $0x60] sm:$0xff]
        %v468 = vld [vmem:[#allocation8 + $0x68] sm:$0xf]
        %v469 = vld [vmem:[#allocation8 + $0x6c] sm:$0xff]
        %v470 = vld [vmem:[#allocation8 + $0x74] sm:$0xf]
        %v471 = vld [vmem:[#allocation8 + $0x78] sm:$0xff]
        %v472 = vld [vmem:[#allocation8 + $0x80] sm:$0xf]
        %v473 = vld [vmem:[#allocation8 + $0x84] sm:$0xff]
        %v474 = vld [vmem:[#allocation8 + $0x8c] sm:$0xf]
        %v475 = vld [vmem:[#allocation8 + $0x90] sm:$0xff]
        %v476 = vld [vmem:[#allocation8 + $0x98] sm:$0xf]
        %v477 = vld [vmem:[#allocation8 + $0x9c] sm:$0xff]
        %v478 = vld [vmem:[#allocation8 + $0xa4] sm:$0xf]
        %v479 = vld [vmem:[#allocation8 + $0xa8] sm:$0xff]
        %v480 = vld [vmem:[#allocation8 + $0xb0] sm:$0xf]
        %v481 = vld [vmem:[#allocation8 + $0xb4] sm:$0xff]
        %v482 = vld [vmem:[#allocation8 + $0xbc] sm:$0xf]
        %v483 = vld [vmem:[%s4] sm:$0x7]
        %v485 = vperm.slane %v483, 0
        %v486 = vperm.slane %v483, 1
        %v487 = vperm.slane %v483, 2
        %v523 = vunpack.c.l.b16 %v451
        %v524 = vunpack.c.h.b16 %v451
        %v525 = vunpack.c.l.b16 %v452
        %v526 = vunpack.c.l.b16 %v453
        %v527 = vunpack.c.h.b16 %v453
        %v528 = vunpack.c.l.b16 %v454
        %v529 = vunpack.c.l.b16 %v455
        %v530 = vunpack.c.h.b16 %v455
        %v531 = vunpack.c.l.b16 %v456
        %v532 = vunpack.c.l.b16 %v457
        %v533 = vunpack.c.h.b16 %v457
        %v534 = vunpack.c.l.b16 %v458
        %v535 = vunpack.c.l.b16 %v459
        %v536 = vunpack.c.h.b16 %v459
        %v537 = vunpack.c.l.b16 %v460
        %v538 = vunpack.c.l.b16 %v461
        %v539 = vunpack.c.h.b16 %v461
        %v540 = vunpack.c.l.b16 %v462
        %v541 = vunpack.c.l.b16 %v463
        %v542 = vunpack.c.h.b16 %v463
        %v543 = vunpack.c.l.b16 %v464
        %v544 = vunpack.c.l.b16 %v465
        %v545 = vunpack.c.h.b16 %v465
        %v546 = vunpack.c.l.b16 %v466
        %v547 = vunpack.c.l.b16 %v467
        %v548 = vunpack.c.h.b16 %v467
        %v549 = vunpack.c.l.b16 %v468
        %v550 = vunpack.c.l.b16 %v469
        %v551 = vunpack.c.h.b16 %v469
        %v552 = vunpack.c.l.b16 %v470
        %v553 = vunpack.c.l.b16 %v471
        %v554 = vunpack.c.h.b16 %v471
        %v555 = vunpack.c.l.b16 %v472
        %v556 = vunpack.c.l.b16 %v473
        %v557 = vunpack.c.h.b16 %v473
        %v558 = vunpack.c.l.b16 %v474
        %v559 = vunpack.c.l.b16 %v475
        %v560 = vunpack.c.h.b16 %v475
        %v561 = vunpack.c.l.b16 %v476
        %v562 = vunpack.c.l.b16 %v477
        %v563 = vunpack.c.h.b16 %v477
        %v564 = vunpack.c.l.b16 %v478
        %v565 = vunpack.c.l.b16 %v479
        %v566 = vunpack.c.h.b16 %v479
        %v567 = vunpack.c.l.b16 %v480
        %v568 = vunpack.c.l.b16 %v481
        %v569 = vunpack.c.h.b16 %v481
        %v570 = vunpack.c.l.b16 %v482
        %v571 = vpack.c.b16 %v526, %v523
        %v572 = vpack.c.b16 %v527, %v524
        %v573 = vpack.c.b16 %v528, %v525
        %v574 = vpack.c.b16 %v532, %v529
        %v575 = vpack.c.b16 %v533, %v530
        %v576 = vpack.c.b16 %v534, %v531
        %v577 = vpack.c.b16 %v538, %v535
        %v578 = vpack.c.b16 %v539, %v536
        %v579 = vpack.c.b16 %v540, %v537
        %v580 = vpack.c.b16 %v544, %v541
        %v581 = vpack.c.b16 %v545, %v542
        %v582 = vpack.c.b16 %v546, %v543
        %v583 = vpack.c.b16 %v550, %v547
        %v584 = vpack.c.b16 %v551, %v548
        %v585 = vpack.c.b16 %v552, %v549
        %v586 = vpack.c.b16 %v556, %v553
        %v587 = vpack.c.b16 %v557, %v554
        %v588 = vpack.c.b16 %v558, %v555
        %v589 = vpack.c.b16 %v562, %v559
        %v590 = vpack.c.b16 %v563, %v560
        %v591 = vpack.c.b16 %v564, %v561
        %v592 = vpack.c.b16 %v568, %v565
        %v593 = vpack.c.b16 %v569, %v566
        %v594 = vpack.c.b16 %v570, %v567
        %619 = vmatpush.bf16.msra.mxu0 %v592
        %620 = vmatpush.bf16.msra.mxu0 %v589
        %621 = vmatpush.bf16.msra.mxu0 %v586
        %622 = vmatpush.bf16.msra.mxu0 %v583
        %623 = vmatpush.bf16.msra.mxu0 %v580
        %624 = vmatpush.bf16.msra.mxu0 %v577
        %625 = vmatpush.bf16.msra.mxu0 %v574
        %626 = vmatpush.bf16.msra.mxu0 %v571
        %627 = vmatmul.bf16.gmra.mxu0 %v450
        %v628 = vpop.f32.mrf.mxu0
        %v629 = vadd.f32 %v485, %v628
        %v630 = vpop.f32.mrf.mxu0
        %v631 = vadd.f32 %v485, %v630
        %632 = vdwg.mxu0
        %633 = vmatpush.bf16.msra.mxu0 %v593
        %634 = vmatpush.bf16.msra.mxu0 %v590
        %635 = vmatpush.bf16.msra.mxu0 %v587
        %636 = vmatpush.bf16.msra.mxu0 %v584
        %637 = vmatpush.bf16.msra.mxu0 %v581
        %638 = vmatpush.bf16.msra.mxu0 %v578
        %639 = vmatpush.bf16.msra.mxu0 %v575
        %640 = vmatpush.bf16.msra.mxu0 %v572
        %641 = vmatmul.bf16.gmra.mxu0 %v450
        %v642 = vpop.f32.mrf.mxu0
        %v643 = vadd.f32 %v486, %v642
        %v644 = vpop.f32.mrf.mxu0
        %v645 = vadd.f32 %v486, %v644
        %646 = vdwg.mxu0
        %647 = vmatpush.bf16.msra.mxu0 %v594
        %648 = vmatpush.bf16.msra.mxu0 %v591
        %649 = vmatpush.bf16.msra.mxu0 %v588
        %650 = vmatpush.bf16.msra.mxu0 %v585
        %651 = vmatpush.bf16.msra.mxu0 %v582
        %652 = vmatpush.bf16.msra.mxu0 %v579
        %653 = vmatpush.bf16.msra.mxu0 %v576
        %654 = vmatpush.bf16.msra.mxu0 %v573
        %655 = vmatmul.bf16.gmra.mxu0 %v450
        %v656 = vpop.f32.mrf.mxu0
        %v657 = vadd.f32 %v487, %v656
        %v658 = vpop.f32.mrf.mxu0
        %v659 = vadd.f32 %v487, %v658
        %660 = vdwg.mxu0
        %v661 = vpack.c.bf16 %v629, %v629
        %v662 = vpack.c.bf16 %v631, %v631
        %vm663 = vcmask 257024
        %664 = vst.msk [vmem:[%s370] sm:$0xf] %vm663, %v661
        %665 = vst.msk [vmem:[%s370 + $0x4] sm:$0xf] %vm663, %v662
        %v666 = vpack.c.bf16 %v643, %v643
        %v667 = vpack.c.bf16 %v645, %v645
        %668 = vst.msk [vmem:[%s377] sm:$0xf] %vm663, %v666
        %669 = vst.msk [vmem:[%s377 + $0x4] sm:$0xf] %vm663, %v667
        %v670 = vpack.c.bf16 %v657, %v657
        %v671 = vpack.c.bf16 %v659, %v659
        %672 = vst.msk [vmem:[%s384] sm:$0xf] %vm663, %v670
        %673 = vst.msk [vmem:[%s384 + $0x4] sm:$0xf] %vm663, %v671
        %676 = vrot.lane.b32.xlu0 %v661, 96
        %v677 = vpop.permute.xlu0 %676
        %678 = vrot.lane.b32.xlu0 %v662, 96
        %v679 = vpop.permute.xlu0 %678
        %s682 = scalar_lea.vmem %s370, 8 [#allocation10]
        %683 = vst.msk [vmem:[%s682] sm:$0xf] %vm663, %v677
        %684 = vst.msk [vmem:[%s682 + $0x4] sm:$0xf] %vm663, %v679
        %687 = vrot.lane.b32.xlu0 %v666, 96
        %v688 = vpop.permute.xlu0 %687
        %689 = vrot.lane.b32.xlu0 %v667, 96
        %v690 = vpop.permute.xlu0 %689
        %s693 = scalar_lea.vmem %s377, 8 [#allocation11]
        %694 = vst.msk [vmem:[%s693] sm:$0xf] %vm663, %v688
        %695 = vst.msk [vmem:[%s693 + $0x4] sm:$0xf] %vm663, %v690
        %698 = vrot.lane.b32.xlu0 %v670, 96
        %v699 = vpop.permute.xlu0 %698
        %700 = vrot.lane.b32.xlu0 %v671, 96
        %v701 = vpop.permute.xlu0 %700
        %s704 = scalar_lea.vmem %s384, 8 [#allocation13]
        %705 = vst.msk [vmem:[%s704] sm:$0xf] %vm663, %v699
        %706 = vst.msk [vmem:[%s704 + $0x4] sm:$0xf] %vm663, %v701
        %707 = vrot.lane.b32.xlu0 %v661, 64
        %v708 = vpop.permute.xlu0 %707
        %709 = vrot.lane.b32.xlu0 %v662, 64
        %v710 = vpop.permute.xlu0 %709
        %s713 = scalar_lea.vmem %s370, 16 [#allocation10]
        %714 = vst.msk [vmem:[%s713] sm:$0xf] %vm663, %v708
        %715 = vst.msk [vmem:[%s713 + $0x4] sm:$0xf] %vm663, %v710
        %716 = vrot.lane.b32.xlu0 %v666, 64
        %v717 = vpop.permute.xlu0 %716
        %718 = vrot.lane.b32.xlu0 %v667, 64
        %v719 = vpop.permute.xlu0 %718
        %s722 = scalar_lea.vmem %s377, 16 [#allocation11]
        %723 = vst.msk [vmem:[%s722] sm:$0xf] %vm663, %v717
        %724 = vst.msk [vmem:[%s722 + $0x4] sm:$0xf] %vm663, %v719
        %725 = vrot.lane.b32.xlu0 %v670, 64
        %v726 = vpop.permute.xlu0 %725
        %727 = vrot.lane.b32.xlu0 %v671, 64
        %v728 = vpop.permute.xlu0 %727
        %s731 = scalar_lea.vmem %s384, 16 [#allocation13]
        %732 = vst.msk [vmem:[%s731] sm:$0xf] %vm663, %v726
        %733 = vst.msk [vmem:[%s731 + $0x4] sm:$0xf] %vm663, %v728
        %734 = vrot.lane.b32.xlu0 %v661, 32
        %v735 = vpop.permute.xlu0 %734
        %736 = vrot.lane.b32.xlu0 %v662, 32
        %v737 = vpop.permute.xlu0 %736
        %s740 = scalar_lea.vmem %s370, 24 [#allocation10]
        %741 = vst.msk [vmem:[%s740] sm:$0xf] %vm663, %v735
        %742 = vst.msk [vmem:[%s740 + $0x4] sm:$0xf] %vm663, %v737
        %743 = vrot.lane.b32.xlu0 %v666, 32
        %v744 = vpop.permute.xlu0 %743
        %745 = vrot.lane.b32.xlu0 %v667, 32
        %v746 = vpop.permute.xlu0 %745
        %s749 = scalar_lea.vmem %s377, 24 [#allocation11]
        %750 = vst.msk [vmem:[%s749] sm:$0xf] %vm663, %v744
        %751 = vst.msk [vmem:[%s749 + $0x4] sm:$0xf] %vm663, %v746
        %752 = vrot.lane.b32.xlu0 %v670, 32
        %v753 = vpop.permute.xlu0 %752
        %754 = vrot.lane.b32.xlu0 %v671, 32
        %v755 = vpop.permute.xlu0 %754
        %s758 = scalar_lea.vmem %s384, 24 [#allocation13]
        %759 = vst.msk [vmem:[%s758] sm:$0xf] %vm663, %v753
        %760 = vst.msk [vmem:[%s758 + $0x4] sm:$0xf] %vm663, %v755
        %s761 = sand.u32 %s164, 1
        %s762 = scalar_lea.sflag [#allocation4], %s761
        %s763 = sand.u32 %s164, 1
        %s764 = smul.addr %s763, 32
        %s765 = scalar_lea.vmem [#allocation10], %s764
        %s766 = sand.u32 %s30, 1
        %s767 = scalar_lea.sflag [#allocation12], %s766
        %s768 = sand.u32 %s192, 1
        %s769 = smul.addr %s768, 32
        %s770 = scalar_lea.vmem [#allocation11], %s769
        %s771 = sand.u32 %s30, 1
        %s772 = scalar_lea.sflag [#allocation12], %s771
        %s773 = sand.u32 %s220, 1
        %s774 = smul.addr %s773, 32
        %s775 = scalar_lea.vmem [#allocation13], %s774
        // Predicated region
        $region57: #{tpu_custom_call.1} parent=39 // pred_check
          %p776 = pneg %p174
        $region58: #{tpu_custom_call.1} parent=39 // pred_check_branch
          %778 = sbr.rel (%p776) target = $region60
        $region59: #{tpu_custom_call.1} parent=39 // pred_region
          #allocation15 [shape = 'u32[6]{0}', space=smem, size = 0x18, scoped, tag = 'DMA stride descriptor']
          %s779 = smul.u32 2, %s35
          %781 = vsyncadd %s762, 0
          %s782 = smul.addr %s34, 16
          %s783 = sadd.s32 %s779, %s782
          %s784 = smul.addr %s783, 4
          %s785 = scalar_lea.hbm %s5, %s784
          %s787 = sshll.u32 1, 14
          %s788 = sxor.u32 4294967295, %s787
          %s791 = sshll.u32 7, 18
          %s792 = sxor.u32 4294967295, %s791
          %s793 = sand.u32 0, %s792
          %s795 = sor.u32 %s793, 0
          %s796 = sshll.u32 %s765, 4
          %s797 = int_to_ptr.vmem [resolvable:$true] %s796
          %s798 = sshll.u32 %s785, 4
          %s799 = int_to_ptr.hbm [resolvable:$true] %s798
          %805 = sst [smem:[#allocation15]] 128
          %s806 = scalar_lea.smem [#allocation15], 1
          %807 = sst [smem:[%s806]] 256
          %s808 = scalar_lea.smem [#allocation15], 2
          %809 = sst [smem:[%s808]] 2
          %s810 = scalar_lea.smem [#allocation15], 3
          %811 = sst [smem:[%s810]] 64
          %s812 = scalar_lea.smem [#allocation15], 4
          %813 = sst [smem:[%s812]] 64
          %s814 = scalar_lea.smem [#allocation15], 5
          %815 = sst [smem:[%s814]] 4
          %817 = dma.general %s797, 512, %s799, %s762, [#allocation14], [#allocation15], %s795, 0
        $region60: #{tpu_custom_call.1} parent=39 // pred_fallthru
          _
        // Predicated region
        $region61: #{tpu_custom_call.1} parent=39 // pred_check
          %p818 = pneg %p202
        $region62: #{tpu_custom_call.1} parent=39 // pred_check_branch
          %820 = sbr.rel (%p818) target = $region64
        $region63: #{tpu_custom_call.1} parent=39 // pred_region
          #allocation17 [shape = 'u32[6]{0}', space=smem, size = 0x18, scoped, tag = 'DMA stride descriptor']
          %s821 = smul.u32 2, %s35
          %823 = vsyncadd %s767, 0
          %s824 = smul.addr %s34, 16
          %s825 = sadd.s32 %s821, %s824
          %s826 = smul.addr %s825, 4
          %s827 = scalar_lea.hbm %s6, %s826
          %s829 = sshll.u32 1, 14
          %s830 = sxor.u32 4294967295, %s829
          %s833 = sshll.u32 7, 18
          %s834 = sxor.u32 4294967295, %s833
          %s835 = sand.u32 0, %s834
          %s837 = sor.u32 %s835, 0
          %s838 = sshll.u32 %s770, 4
          %s839 = int_to_ptr.vmem [resolvable:$true] %s838
          %s840 = sshll.u32 %s827, 4
          %s841 = int_to_ptr.hbm [resolvable:$true] %s840
          %847 = sst [smem:[#allocation17]] 128
          %s848 = scalar_lea.smem [#allocation17], 1
          %849 = sst [smem:[%s848]] 256
          %s850 = scalar_lea.smem [#allocation17], 2
          %851 = sst [smem:[%s850]] 2
          %s852 = scalar_lea.smem [#allocation17], 3
          %853 = sst [smem:[%s852]] 64
          %s854 = scalar_lea.smem [#allocation17], 4
          %855 = sst [smem:[%s854]] 64
          %s856 = scalar_lea.smem [#allocation17], 5
          %857 = sst [smem:[%s856]] 4
          %859 = dma.general %s839, 512, %s841, %s767, [#allocation16], [#allocation17], %s837, 0
        $region64: #{tpu_custom_call.1} parent=39 // pred_fallthru
          _
        // Predicated region
        $region65: #{tpu_custom_call.1} parent=39 // pred_check
          %p860 = pneg %p230
        $region66: #{tpu_custom_call.1} parent=39 // pred_check_branch
          %862 = sbr.rel (%p860) target = $region68
        $region67: #{tpu_custom_call.1} parent=39 // pred_region
          #allocation19 [shape = 'u32[6]{0}', space=smem, size = 0x18, scoped, tag = 'DMA stride descriptor']
          %s863 = smul.u32 2, %s35
          %865 = vsyncadd %s772, 0
          %s866 = smul.addr %s34, 16
          %s867 = sadd.s32 %s863, %s866
          %s868 = smul.addr %s867, 4
          %s869 = scalar_lea.hbm %s7, %s868
          %s871 = sshll.u32 1, 14
          %s872 = sxor.u32 4294967295, %s871
          %s875 = sshll.u32 7, 18
          %s876 = sxor.u32 4294967295, %s875
          %s877 = sand.u32 0, %s876
          %s879 = sor.u32 %s877, 0
          %s880 = sshll.u32 %s775, 4
          %s881 = int_to_ptr.vmem [resolvable:$true] %s880
          %s882 = sshll.u32 %s869, 4
          %s883 = int_to_ptr.hbm [resolvable:$true] %s882
          %889 = sst [smem:[#allocation19]] 128
          %s890 = scalar_lea.smem [#allocation19], 1
          %891 = sst [smem:[%s890]] 256
          %s892 = scalar_lea.smem [#allocation19], 2
          %893 = sst [smem:[%s892]] 2
          %s894 = scalar_lea.smem [#allocation19], 3
          %895 = sst [smem:[%s894]] 64
          %s896 = scalar_lea.smem [#allocation19], 4
          %897 = sst [smem:[%s896]] 64
          %s898 = scalar_lea.smem [#allocation19], 5
          %899 = sst [smem:[%s898]] 4
          %901 = dma.general %s881, 512, %s883, %s772, [#allocation18], [#allocation19], %s879, 0
        $region68: #{tpu_custom_call.1} parent=39 // pred_fallthru
          _
      $region40: #{tpu_custom_call.1} parent=5 // pred_fallthru
        _
      %p902 = scmp.le.s32.totalorder 2, %s25
      // Predicated region
      $region69: #{tpu_custom_call.1} parent=5 // pred_check
        %p903 = pneg %p902
      $region70: #{tpu_custom_call.1} parent=5 // pred_check_branch
        %905 = sbr.rel (%p903) target = $region72
      $region71: #{tpu_custom_call.1} parent=5 // pred_region
        %s906 = ssub.s32 %s25, 2
        // Predicated region
        $region73: #{tpu_custom_call.1} parent=71 // pred_check
          %p907 = pneg %p180
        $region74: #{tpu_custom_call.1} parent=71 // pred_check_branch
          %909 = sbr.rel (%p907) target = $region76
        $region75: #{tpu_custom_call.1} parent=71 // pred_region
          %s910 = sand.u32 %s165, 1
          %s911 = scalar_lea.sflag [#allocation4], %s910
          %s912 = sand.u32 %s165, 1
          %s913 = smul.addr %s912, 32
          %s914 = scalar_lea.vmem [#allocation10], %s913
          %916 = dma.done %s911, 512
        $region76: #{tpu_custom_call.1} parent=71 // pred_fallthru
          _
        // Predicated region
        $region77: #{tpu_custom_call.1} parent=71 // pred_check
          %p917 = pneg %p208
        $region78: #{tpu_custom_call.1} parent=71 // pred_check_branch
          %919 = sbr.rel (%p917) target = $region80
        $region79: #{tpu_custom_call.1} parent=71 // pred_region
          %s920 = sand.u32 %s31, 1
          %s921 = scalar_lea.sflag [#allocation12], %s920
          %s922 = sand.u32 %s193, 1
          %s923 = smul.addr %s922, 32
          %s924 = scalar_lea.vmem [#allocation11], %s923
          %926 = dma.done %s921, 512
        $region80: #{tpu_custom_call.1} parent=71 // pred_fallthru
          _
        // Predicated region
        $region81: #{tpu_custom_call.1} parent=71 // pred_check
          %p927 = pneg %p236
        $region82: #{tpu_custom_call.1} parent=71 // pred_check_branch
          %929 = sbr.rel (%p927) target = $region84
        $region83: #{tpu_custom_call.1} parent=71 // pred_region
          %s930 = sand.u32 %s31, 1
          %s931 = scalar_lea.sflag [#allocation12], %s930
          %s932 = sand.u32 %s221, 1
          %s933 = smul.addr %s932, 32
          %s934 = scalar_lea.vmem [#allocation13], %s933
          %936 = dma.done %s931, 512
        $region84: #{tpu_custom_call.1} parent=71 // pred_fallthru
          _
      $region72: #{tpu_custom_call.1} parent=5 // pred_fallthru
        _
    $region6: #{tpu_custom_call.1} parent=1 // loop_footer
      %s29 = sadd.s32 1, %s25
    $region7: #{tpu_custom_call.1} parent=1 // loop_footer_branch
      %24 = sbr.rel target = $region3
    $region8: #{tpu_custom_call.1} parent=1 // loop_exit
      _
    %937 = vsyncpa [#allocation3], 1
    %s938 = scalar_lea.sflag [#allocation3], 1
    %939 = vsyncpa %s938, 1
    %940 = vsyncpa [#allocation6], 1
    %941 = vsyncpa [#allocation9], 1
    %942 = vsyncpa [#allocation4], 1
    %s943 = scalar_lea.sflag [#allocation4], 1
    %944 = vsyncpa %s943, 1
    %945 = vsyncpa [#allocation12], 1
    %s946 = scalar_lea.sflag [#allocation12], 1
    %947 = vsyncpa %s946, 1

</llo_original>
